<compile_context>
chip_gen: v5e
topology: v5e:2x2
jax: 0.10.0
libtpu: 0.0.40
codegen_flags: <defaults>
</compile_context>

<pallas_src>
import jax
import jax.numpy as jnp
from jax import lax
from jax.experimental import pallas as pl
from jax.experimental.pallas import tpu as pltpu

BN_EPS = 1e-5
LEAKY_SLOPE = 0.1
LANE = 128


def _round_up(x, m):
    return ((x + m - 1) // m) * m


# ----------------------------- device heuristics -----------------------------
_DEVICE_KIND = None


def _device_kind():
    global _DEVICE_KIND
    if _DEVICE_KIND is None:
        try:
            _DEVICE_KIND = jax.devices()[0].device_kind.lower()
        except Exception:
            _DEVICE_KIND = ""
    return _DEVICE_KIND


def _vmem_limit_bytes():
    kind = _device_kind()
    if ("v4" in kind) or ("v5" in kind) or ("v6" in kind):
        return 64 * 1024 * 1024   # 128 MiB physical VMEM -> plenty of headroom
    return 32 * 1024 * 1024       # v7x: 64 MiB / TensorCore -> stay conservative


def _pick_tn(cpo):
    # v6e/v7x MXUs are 256 wide -> prefer a 256-lane output tile when the padded
    # channel count allows it.  v5e (128-wide MXU) keeps TN = 128.
    kind = _device_kind()
    if "v5" not in kind and cpo % 256 == 0:
        return 256
    return 128


def _pick_batch_tile(n, hw, cin_p, tn):
    """Stack batches into the matmul M dim, but keep >=2 blocks along the batch
    grid axis when the batch allows it (megacore / 2-TC sharding)."""
    budget = 8 * 1024 * 1024

    def step_bytes(bt):
        # x block (bf16) + y block (<=f32) + f32 accumulator, x2 double-buffer.
        return 2 * bt * hw * (cin_p * 2 + tn * 4 + tn * 4)

    target = max(1, n // 2)
    best = 1
    for bt in range(1, target + 1):
        if n % bt == 0 and step_bytes(bt) <= budget:
            best = bt
    return best


# --------------------------- roll direction probe ----------------------------
_ROLL_MODE = None


def _probe_roll_mode():
    """Detect pltpu.roll availability/direction with a tiny probe kernel so the
    3x3 tap shift can never silently produce a spatially flipped conv."""
    def k(x_ref, o_ref):
        o_ref[...] = pltpu.roll(x_ref[...], shift=1, axis=0)

    x = jnp.arange(8 * 128, dtype=jnp.float32).reshape(8, 128)
    try:
        y = pl.pallas_call(k, out_shape=jax.ShapeDtypeStruct((8, 128), jnp.float32))(x)
        y = jax.block_until_ready(y)
        if bool(jnp.array_equal(y, jnp.roll(x, 1, axis=0))):
            return "jnp"   # pltpu.roll(x, s)[i] == x[(i - s) % n]
        if bool(jnp.array_equal(y, jnp.roll(x, -1, axis=0))):
            return "neg"
    except Exception:
        pass
    return "fallback"      # jnp.roll (slower slice+concat relayout), still correct


def _roll_mode():
    global _ROLL_MODE
    if _ROLL_MODE is None:
        _ROLL_MODE = _probe_roll_mode()
    return _ROLL_MODE


def _row_shift(t, d, m, mode):
    """Return u with u[r] = t[(r + d) % m]; wrapped rows are masked by caller."""
    if d == 0:
        return t
    if mode == "jnp":
        return pltpu.roll(t, shift=(-d) % m, axis=0)
    if mode == "neg":
        return pltpu.roll(t, shift=d % m, axis=0)
    return jnp.roll(t, -d, axis=0)


# --------------------------------- kernels -----------------------------------
def _make_conv_kernel(*, k, pad, H, W, B_t, TN, apply_prologue, roll_mode):
    HW = H * W
    M = B_t * HW

    def kernel(x_ref, sc_ref, sh_ref, w_ref, y_ref, stats_ref, acc_ref):
        # ---- fused prologue: previous layer's BN (scale/shift) + LeakyReLU ----
        # x_ref holds the previous layer's RAW conv output (bf16).  Applying the
        # per-channel scale/shift + LeakyReLU here, right after the DMA, removes
        # a full HBM write+read of the activation per layer.
        if apply_prologue:
            z = x_ref[...].reshape(M, -1).astype(jnp.float32)
            z = z * sc_ref[...] + sh_ref[...]
            a = jnp.maximum(z, LEAKY_SLOPE * z).astype(jnp.bfloat16)
        else:
            a = x_ref[...].reshape(M, -1)

        # ---- conv as matmul(s) on the flat (M, Cin_p) activation ----
        if k == 1:
            acc_ref[...] = jnp.dot(a, w_ref[0], preferred_element_type=jnp.float32)
        else:
            # One MXU dot per tap; the spatial (dh, dw) shift of each tap is
            # applied to the (M, TN) tap result with an XLU row-rotate plus a
            # boundary mask, so no misaligned slice/reshape relayout copies of
            # the activation are materialized.
            m_idx = lax.broadcasted_iota(jnp.int32, (M, 1), 0)
            h_idx = (m_idx // W) % H
            w_idx = m_idx % W
            for kh in range(k):
                for kw in range(k):
                    dh, dw = kh - pad, kw - pad
                    t = jnp.dot(a, w_ref[kh * k + kw],
                                preferred_element_type=jnp.float32)
                    t = _row_shift(t, dh * W + dw, M, roll_mode)
                    conds = []
                    if dh < 0:
                        conds.append(h_idx >= -dh)
                    if dh > 0:
                        conds.append(h_idx < H - dh)
                    if dw < 0:
                        conds.append(w_idx >= -dw)
                    if dw > 0:
                        conds.append(w_idx < W - dw)
                    if conds:
                        valid = conds[0]
                        for c in conds[1:]:
                            valid = valid & c
                        t = jnp.where(valid, t, 0.0)
                    if kh == 0 and kw == 0:
                        acc_ref[...] = t
                    else:
                        acc_ref[...] += t

        acc = acc_ref[...]
        # Raw conv output for the next layer (bf16 except for the last layer).
        y_ref[...] = acc.reshape(B_t, HW, TN).astype(y_ref.dtype)
        # BatchNorm partial statistics from the f32 accumulator, emitted as a
        # full 8-sublane block so the store is unmasked / DMA isn't tiny.
        ssum = jnp.sum(acc, axis=0, keepdims=True)
        ssq = jnp.sum(acc * acc, axis=0, keepdims=True)
        stats_ref[0] = jnp.concatenate(
            [ssum, ssq, jnp.zeros((6, TN), jnp.float32)], axis=0)

    return kernel


def _final_bn_act_kernel(y_ref, sc_ref, sh_ref, o_ref):
    z = y_ref[...].astype(jnp.float32) * sc_ref[...] + sh_ref[...]
    o_ref[...] = jnp.maximum(z, LEAKY_SLOPE * z).astype(o_ref.dtype)


# --------------------------------- wrappers ----------------------------------
def _conv_layer(a, in_scale, in_shift, w_oihw, k, pad, H, W, *,
                apply_prologue, y_dtype):
    """Fused [prev-layer BN+LeakyReLU prologue] + Conv2d + BN-stats pass.

    a: (N, H*W, Cin_p) bf16 raw conv output of the previous layer (or the
       network input for layer 0), channels zero-padded to a multiple of 128.
    Returns y (N, H*W, Cout_p) raw conv output and stats (n_b, 8, Cout_p)
    with row0 = per-channel sum, row1 = per-channel sum of squares.
    """
    N, HW, Cpi = a.shape
    Cout, Cin = int(w_oihw.shape[0]), int(w_oihw.shape[1])
    Cpo = _round_up(Cout, LANE)
    KK = k * k
    TN = _pick_tn(Cpo)
    n_j = Cpo // TN

    # weights: (O, I, kh, kw) -> (k*k, Cin_p, Cout_p) bf16, channel-padded so
    # every MXU operand / output store is lane-dense (padding is numerically
    # inert: zero weights / gamma / beta -> zero outputs).
    wt = jnp.transpose(w_oihw, (2, 3, 1, 0))
    wt = jnp.pad(wt, ((0, 0), (0, 0), (0, Cpi - Cin), (0, Cpo - Cout)))
    wt = wt.reshape(KK, Cpi, Cpo).astype(jnp.bfloat16)

    B_t = _pick_batch_tile(N, HW, Cpi, TN)
    n_b = N // B_t
    M = B_t * HW

    roll_mode = _roll_mode() if k > 1 else "jnp"   # probe resolved OUTSIDE tracing
    kernel = _make_conv_kernel(k=k, pad=pad, H=H, W=W, B_t=B_t, TN=TN,
                               apply_prologue=apply_prologue, roll_mode=roll_mode)

    # Grid ordering: put the index of the LARGER operand on the outer axis so it
    # is DMA'd exactly once while the smaller operand is the one re-fetched.
    act_bytes = N * HW * Cpi * a.dtype.itemsize
    w_bytes = KK * Cpi * Cpo * 2
    weight_major = (w_bytes + act_bytes * n_j) <= (act_bytes + w_bytes * n_b)
    if weight_major:
        grid = (n_j, n_b)
        x_map = lambda j, b: (b, 0, 0)
        s_map = lambda j, b: (0, 0)
        w_map = lambda j, b: (0, 0, j)
        o_map = lambda j, b: (b, 0, j)
    else:
        grid = (n_b, n_j)
        x_map = lambda b, j: (b, 0, 0)
        s_map = lambda b, j: (0, 0)
        w_map = lambda b, j: (0, 0, j)
        o_map = lambda b, j: (b, 0, j)

    if in_scale is None:  # first layer: no prologue, dummy scale/shift
        in_scale = jnp.ones((1, Cpi), jnp.float32)
        in_shift = jnp.zeros((1, Cpi), jnp.float32)

    cost = pl.CostEstimate(
        flops=2 * N * HW * KK * Cpi * Cpo + 4 * N * HW * Cpi,
        transcendentals=0,
        bytes_accessed=(act_bytes + w_bytes + 2 * Cpi * 4
                        + N * HW * Cpo * jnp.dtype(y_dtype).itemsize
                        + n_b * 8 * Cpo * 4))

    y, stats = pl.pallas_call(
        kernel,
        grid=grid,
        in_specs=[pl.BlockSpec((B_t, HW, Cpi), x_map),
                  pl.BlockSpec((1, Cpi), s_map),
                  pl.BlockSpec((1, Cpi), s_map),
                  pl.BlockSpec((KK, Cpi, TN), w_map)],
        out_specs=(pl.BlockSpec((B_t, HW, TN), o_map),
                   pl.BlockSpec((1, 8, TN), o_map)),
        out_shape=(jax.ShapeDtypeStruct((N, HW, Cpo), y_dtype),
                   jax.ShapeDtypeStruct((n_b, 8, Cpo), jnp.float32)),
        scratch_shapes=[pltpu.VMEM((M, TN), jnp.float32)],
        compiler_params=pltpu.CompilerParams(
            dimension_semantics=("parallel", "parallel"),
            vmem_limit_bytes=_vmem_limit_bytes()),
        cost_estimate=cost,
    )(a, in_scale, in_shift, wt)

    return y, stats


def _bn_scale_shift(stats, gamma, beta, m_total, cpo):
    """Fold partial sums into training-mode BatchNorm scale/shift (per channel)."""
    s = jnp.sum(stats, axis=0)                  # (8, Cpo): row0 = sum, row1 = sumsq
    mean = s[0] / m_total
    # biased variance, E[x^2]-E[x]^2 in f32 (fine at the validated tolerance)
    var = jnp.maximum(s[1] / m_total - mean * mean, 0.0)
    cout = gamma.shape[0]
    gam = jnp.pad(gamma.astype(jnp.float32), (0, cpo - cout))
    bet = jnp.pad(beta.astype(jnp.float32), (0, cpo - cout))
    scale = gam * lax.rsqrt(var + BN_EPS)
    shift = bet - mean * scale
    return scale.reshape(1, cpo), shift.reshape(1, cpo)


def _final_bn_act(y, scale, shift):
    """Standalone BN + LeakyReLU for the last layer only (no next conv to fuse into)."""
    N, HW, Cpo = y.shape
    TN = _pick_tn(Cpo)
    n_j = Cpo // TN
    B_t = _pick_batch_tile(N, HW, Cpo, TN)
    n_b = N // B_t
    cost = pl.CostEstimate(
        flops=3 * N * HW * Cpo, transcendentals=0,
        bytes_accessed=N * HW * Cpo * (y.dtype.itemsize + 4) + 2 * Cpo * 4)
    return pl.pallas_call(
        _final_bn_act_kernel,
        grid=(n_b, n_j),
        in_specs=[pl.BlockSpec((B_t, HW, TN), lambda b, j: (b, 0, j)),
                  pl.BlockSpec((1, TN), lambda b, j: (0, j)),
                  pl.BlockSpec((1, TN), lambda b, j: (0, j))],
        out_specs=pl.BlockSpec((B_t, HW, TN), lambda b, j: (b, 0, j)),
        out_shape=jax.ShapeDtypeStruct((N, HW, Cpo), jnp.float32),
        compiler_params=pltpu.CompilerParams(
            dimension_semantics=("parallel", "parallel"),
            vmem_limit_bytes=_vmem_limit_bytes()),
        cost_estimate=cost,
    )(y, scale, shift)


def converlutional_set_pallas(x_nchw, params):
    """Full ConverlutionalSet forward. Input/output are NCHW (PyTorch layout)."""
    N, C, H, W = x_nchw.shape
    HW = H * W
    Cp = _round_up(C, LANE)
    a = jnp.transpose(x_nchw, (0, 2, 3, 1)).reshape(N, HW, C).astype(jnp.bfloat16)
    a = jnp.pad(a, ((0, 0), (0, 0), (0, Cp - C)))

    scale = shift = None
    n_layers = len(params)
    for i, (w, g, b, k, pad) in enumerate(params):
        last = (i == n_layers - 1)
        y, stats = _conv_layer(a, scale, shift, w, k, pad, H, W,
                               apply_prologue=(i > 0),
                               y_dtype=jnp.float32 if last else jnp.bfloat16)
        scale, shift = _bn_scale_shift(stats, g, b, float(N * HW), y.shape[-1])
        a = y

    out = _final_bn_act(a, scale, shift)              # (N, HW, Cpo_last) f32
    c_final = params[-1][0].shape[0]
    out = out[:, :, :c_final].reshape(N, H, W, c_final)
    return jnp.transpose(out, (0, 3, 1, 2))


# ----------------------- pure-JAX reference (for checking) -------------------
def _ref_layer(x_nchw, w, gamma, beta, k, pad):
    y = lax.conv_general_dilated(
        x_nchw, w, window_strides=(1, 1),
        padding=[(pad, pad), (pad, pad)],
        dimension_numbers=("NCHW", "OIHW", "NCHW"))
    mean = y.mean(axis=(0, 2, 3), keepdims=True)
    var = ((y - mean) ** 2).mean(axis=(0, 2, 3), keepdims=True)
    yn = (y - mean) / jnp.sqrt(var + BN_EPS)
    yb = yn * gamma.reshape(1, -1, 1, 1) + beta.reshape(1, -1, 1, 1)
    return jnp.where(yb > 0, yb, LEAKY_SLOPE * yb)


def converlutional_set_ref(x_nchw, params):
    y = x_nchw
    for (w, g, b, k, pad) in params:
        y = _ref_layer(y, w, g, b, k, pad)
    return y


if __name__ == "__main__":
    key = jax.random.PRNGKey(0)
    N, C_IN, H, W = 2, 4, 16, 16
    C_OUT = 8

    keys = jax.random.split(key, 16)
    x = jax.random.normal(keys[0], (N, C_IN, H, W), dtype=jnp.float32)

    # (cin, cout, kernel, padding) per Converlutional block.
    cfgs = [
        (C_IN, C_OUT, 1, 0),
        (C_OUT, C_IN, 3, 1),
        (C_IN, C_OUT, 1, 0),
        (C_OUT, C_IN, 3, 1),
        (C_IN, C_OUT, 1, 0),
    ]

    params = []
    ki = 1
    for (ci, co, k, pad) in cfgs:
        w = 0.1 * jax.random.normal(keys[ki], (co, ci, k, k), dtype=jnp.float32); ki += 1
        g = 1.0 + 0.1 * jax.random.normal(keys[ki], (co,), dtype=jnp.float32); ki += 1
        b = 0.1 * jax.random.normal(keys[ki], (co,), dtype=jnp.float32); ki += 1
        params.append((w, g, b, k, pad))

    out = converlutional_set_pallas(x, params)
    out = jax.block_until_ready(out)

    ref = converlutional_set_ref(x, params)
    assert out.shape == (N, C_OUT, H, W), out.shape
    max_err = float(jnp.max(jnp.abs(out - ref)))
    # bf16 matmul operands / bf16 inter-layer raw activations through 5 stacked
    # layers -> loose tolerance vs. the f32 reference.
    assert jnp.allclose(out, ref, rtol=1e-1, atol=1e-1), f"max abs err = {max_err}"

    print("KERNEL_OK")
</pallas_src>

<mosaic_0001>
module attributes {stable_mosaic.version = 11 : i64} {
  func.func @kernel(%arg0: i32, %arg1: i32, %arg2: memref<1x256x128xbf16, #tpu.memory_space<vmem>>, %arg3: memref<1x128xf32, #tpu.memory_space<vmem>>, %arg4: memref<1x128xf32, #tpu.memory_space<vmem>>, %arg5: memref<1x128x128xbf16, #tpu.memory_space<vmem>>, %arg6: memref<1x256x128xbf16, #tpu.memory_space<vmem>>, %arg7: memref<1x8x128xf32, #tpu.memory_space<vmem>>, %arg8: memref<256x128xf32, #tpu.memory_space<vmem>>) attributes {dimension_semantics = [#tpu.dimension_semantics<parallel>, #tpu.dimension_semantics<parallel>], iteration_bounds = array<i64: 1, 2>, scalar_prefetch = 0 : i64, scratch_operands = 1 : i64, tpu.core_type = #tpu.core_type<tc>, window_params = [{transform_indices = @transform_0, window_bounds = array<i64: 1, 256, 128>}, {pipeline_mode = #tpu.pipeline_mode<synchronous>, transform_indices = @transform_1, window_bounds = array<i64: 1, 128>}, {pipeline_mode = #tpu.pipeline_mode<synchronous>, transform_indices = @transform_2, window_bounds = array<i64: 1, 128>}, {transform_indices = @transform_3, window_bounds = array<i64: 1, 128, 128>}, {transform_indices = @transform_4, window_bounds = array<i64: 1, 256, 128>}, {transform_indices = @transform_5, window_bounds = array<i64: 1, 8, 128>}]} {
    %c0 = arith.constant 0 : index
    %c0_0 = arith.constant 0 : index
    %c0_1 = arith.constant 0 : index
    %0 = vector.load %arg2[%c0, %c0_0, %c0_1] : memref<1x256x128xbf16, #tpu.memory_space<vmem>>, vector<1x256x128xbf16>
    %1 = vector.shape_cast %0 : vector<1x256x128xbf16> to vector<256x128xbf16>
    %c0_2 = arith.constant 0 : index
    %c0_3 = arith.constant 0 : index
    %c0_4 = arith.constant 0 : index
    %2 = vector.load %arg5[%c0_2, %c0_3, %c0_4] : memref<1x128x128xbf16, #tpu.memory_space<vmem>>, vector<1x128x128xbf16>
    %3 = vector.shape_cast %2 : vector<1x128x128xbf16> to vector<128x128xbf16>
    %cst = arith.constant dense<0.000000e+00> : vector<256x128xf32>
    %4 = tpu.matmul %1, %3, %cst {dimension_numbers = #tpu.dot_dimension_numbers<[1], [0], [0], [1], [0, 0, 1, 1], [], []>} : vector<256x128xbf16>, vector<128x128xbf16>, vector<256x128xf32> -> vector<256x128xf32>
    %c0_5 = arith.constant 0 : index
    %c0_6 = arith.constant 0 : index
    %5 = vector.load %arg8[%c0_5, %c0_6] : memref<256x128xf32, #tpu.memory_space<vmem>>, vector<256x128xf32>
    tpu.vector_store %arg8[%c0_5, %c0_6], %4 {strides = array<i32>} : memref<256x128xf32, #tpu.memory_space<vmem>>, vector<256x128xf32>,
    %c0_7 = arith.constant 0 : index
    %c0_8 = arith.constant 0 : index
    %6 = vector.load %arg8[%c0_7, %c0_8] : memref<256x128xf32, #tpu.memory_space<vmem>>, vector<256x128xf32>
    %7 = vector.shape_cast %6 : vector<256x128xf32> to vector<1x256x128xf32>
    %8 = arith.truncf %7 : vector<1x256x128xf32> to vector<1x256x128xbf16>
    %c0_9 = arith.constant 0 : index
    %c0_10 = arith.constant 0 : index
    %c0_11 = arith.constant 0 : index
    %9 = vector.load %arg6[%c0_9, %c0_10, %c0_11] : memref<1x256x128xbf16, #tpu.memory_space<vmem>>, vector<1x256x128xbf16>
    tpu.vector_store %arg6[%c0_9, %c0_10, %c0_11], %8 {strides = array<i32>} : memref<1x256x128xbf16, #tpu.memory_space<vmem>>, vector<1x256x128xbf16>,
    %cst_12 = arith.constant dense<0.000000e+00> : vector<128xf32>
    %10 = vector.multi_reduction <add>, %6, %cst_12 [0] : vector<256x128xf32> to vector<128xf32>
    %11 = vector.shape_cast %10 : vector<128xf32> to vector<1x128xf32>
    %12 = arith.mulf %6, %6 : vector<256x128xf32>
    %cst_13 = arith.constant dense<0.000000e+00> : vector<128xf32>
    %13 = vector.multi_reduction <add>, %12, %cst_13 [0] : vector<256x128xf32> to vector<128xf32>
    %14 = vector.shape_cast %13 : vector<128xf32> to vector<1x128xf32>
    %cst_14 = arith.constant 0.000000e+00 : f32
    %15 = vector.broadcast %cst_14 : f32 to vector<6x128xf32>
    %16 = tpu.concatenate %11, %14, %15 in 0 : vector<1x128xf32>, vector<1x128xf32>, vector<6x128xf32> -> vector<8x128xf32>
    %c0_15 = arith.constant 0 : index
    %c0_16 = arith.constant 0 : index
    %c0_17 = arith.constant 0 : index
    %17 = vector.load %arg7[%c0_15, %c0_16, %c0_17] : memref<1x8x128xf32, #tpu.memory_space<vmem>>, vector<1x8x128xf32>
    %18 = vector.shape_cast %17 : vector<1x8x128xf32> to vector<8x128xf32>
    %19 = vector.shape_cast %16 : vector<8x128xf32> to vector<1x8x128xf32>
    tpu.vector_store %arg7[%c0_15, %c0_16, %c0_17], %19 {strides = array<i32>} : memref<1x8x128xf32, #tpu.memory_space<vmem>>, vector<1x8x128xf32>,
    return
  }
  func.func @transform_0(%arg0: i32, %arg1: i32) -> (i32, i32, i32) {
    %c0_i32 = arith.constant 0 : i32
    %c0_i32_0 = arith.constant 0 : i32
    %c0_i32_1 = arith.constant 0 : i32
    return %arg1, %c0_i32, %c0_i32_0 : i32, i32, i32
  }
  func.func @transform_1(%arg0: i32, %arg1: i32) -> (i32, i32) {
    %c0_i32 = arith.constant 0 : i32
    %c0_i32_0 = arith.constant 0 : i32
    %c0_i32_1 = arith.constant 0 : i32
    return %c0_i32, %c0_i32_0 : i32, i32
  }
  func.func @transform_2(%arg0: i32, %arg1: i32) -> (i32, i32) {
    %c0_i32 = arith.constant 0 : i32
    %c0_i32_0 = arith.constant 0 : i32
    %c0_i32_1 = arith.constant 0 : i32
    return %c0_i32, %c0_i32_0 : i32, i32
  }
  func.func @transform_3(%arg0: i32, %arg1: i32) -> (i32, i32, i32) {
    %c0_i32 = arith.constant 0 : i32
    %c0_i32_0 = arith.constant 0 : i32
    %c0_i32_1 = arith.constant 0 : i32
    return %c0_i32, %c0_i32_0, %arg0 : i32, i32, i32
  }
  func.func @transform_4(%arg0: i32, %arg1: i32) -> (i32, i32, i32) {
    %c0_i32 = arith.constant 0 : i32
    %c0_i32_0 = arith.constant 0 : i32
    return %arg1, %c0_i32, %arg0 : i32, i32, i32
  }
  func.func @transform_5(%arg0: i32, %arg1: i32) -> (i32, i32, i32) {
    %c0_i32 = arith.constant 0 : i32
    %c0_i32_0 = arith.constant 0 : i32
    return %arg1, %c0_i32, %arg0 : i32, i32, i32
  }
}

</mosaic_0001>

<llo_original>
// kernel: tpu_custom_call.1
$region0: #{tpu_custom_call.1}
  #allocation0 [shape = 'u32[]', space=smem, size = 0x4, offset = 0x4, fixed_abs, tag = 'smem constant byte address 0x4 - core index']
  #allocation1 [shape = 'u32[72,128]{1,0:T(1,128)}', space=vmem, size = 0x9000, scoped, tag = 'internal scratch']
  #allocation2 [shape = 'f32[256,128]{1,0:T(8,128)}', space=vmem, size = 0x20000, scoped, tag = 'scratch operand']
  %s0 = inlined_call_operand.hbm [shape: bf16[2,256,128], index: 0, kind: input, shape index: {}]
  %s1 = inlined_call_operand.hbm [shape: f32[1,128], index: 1, kind: input, shape index: {}]
  %s2 = inlined_call_operand.vmem [shape: f32[1,128], index: 2, kind: input, shape index: {}]
  %s3 = inlined_call_operand.hbm [shape: bf16[1,128,128], index: 3, kind: input, shape index: {}]
  %s4 = inlined_call_operand.hbm [shape: bf16[2,256,128], index: 4, kind: output, shape index: {0}]
  %s5 = inlined_call_operand.hbm [shape: f32[2,8,128], index: 5, kind: output, shape index: {1}]
  %6 = xla_tuple %s4, %s5
  %s7 = sld [smem:[#allocation0]]
  $region69: #{tpu_custom_call.1} parent=0
    _
  %s9 = ssub.s32 1, %s7
  %s10 = scalar_select 0, %s9, %s7
  $region1: #{tpu_custom_call.1} parent=0
    #allocation3 [shape = 'u8[131072]{0}', space=vmem, size = 0x20000, scoped, tag = 'input window, operand 0']
    #allocation4 [shape = 's32[2]{0}', space=sflag, size = 0x8, scoped, tag = 'scoped memory for tpu_custom_call.1']
    #allocation5 [shape = 's32[2]{0}', space=sflag, size = 0x8, scoped, tag = 'scoped memory for tpu_custom_call.1']
    #allocation6 [shape = 'u8[512]{0}', space=vmem, size = 0x400, scoped, tag = 'input window, operand 1, single buffered']
    #allocation7 [shape = 's32[1]{0}', space=sflag, size = 0x4, scoped, tag = 'scoped memory for tpu_custom_call.1']
    #allocation8 [shape = 'u8[32768]{0}', space=vmem, size = 0x8000, scoped, tag = 'input window, operand 3, single buffered']
    #allocation9 [shape = 'u8[131072]{0}', space=vmem, size = 0x20000, scoped, tag = 'output window, operand 0']
    #allocation10 [shape = 'u8[8192]{0}', space=vmem, size = 0x2000, scoped, tag = 'output window, operand 1']
    #allocation11 [shape = 's32[2]{0}', space=sflag, size = 0x8, scoped, tag = 'scoped memory for tpu_custom_call.1']
    %11 = vsyncpa [#allocation4], 0
    %s12 = scalar_lea.sflag [#allocation4], 1
    %13 = vsyncpa %s12, 0
    %14 = vsyncpa [#allocation7], 0
    %15 = vsyncpa [#allocation5], 0
    %s16 = scalar_lea.sflag [#allocation5], 1
    %17 = vsyncpa %s16, 0
    %18 = vsyncpa [#allocation11], 0
    %s19 = scalar_lea.sflag [#allocation11], 1
    %20 = vsyncpa %s19, 0
    loop: start=0, step=1, limit=4
    $region2: #{tpu_custom_call.1} parent=1 // loop_pre_header
      _
    $region3: #{tpu_custom_call.1} parent=1 // loop_header
      %s22 = sphi 0, %s26
      %p23 = scmp.ge.s32.totalorder %s22, 4
      %s29 = sphi 0, %s41
      %s30 = sphi 0, %s37
      %s31 = sphi 0, %s29
      %s32 = sphi 0, %s30
      %s33 = sphi 0, %s31
      %s34 = sphi 0, %s32
      %s44 = sphi 0, %s46
      %s47 = sphi 0, %s44
      %s48 = sphi 0, %s47
      %s64 = sphi 0, %s48
      %s68 = sphi 0, %s68
      %s70 = sphi 0, %s68
      %s71 = sphi 0, %s70
      %s85 = sphi 0, %s71
      %s89 = sphi 0, %s89
      %s91 = sphi 0, %s89
      %s92 = sphi 0, %s91
      %s106 = sphi 0, %s92
      %s112 = sphi 0, %s114
      %s115 = sphi 0, %s112
      %s116 = sphi 0, %s115
      %s132 = sphi 0, %s116
      %s140 = sphi 0, %s142
      %s143 = sphi 0, %s140
      %s144 = sphi 0, %s143
      %s160 = sphi 0, %s144
      %s168 = sphi 0, %s170
      %s171 = sphi 0, %s168
      %s172 = sphi 0, %s171
      %s188 = sphi 0, %s172
    $region4: #{tpu_custom_call.1} parent=1 // loop_header_branch
      %25 = sbr.rel (%p23) target = $region8
    $region5: #{tpu_custom_call.1} parent=1 // loop_body
      %s27 = ssub.s32 %s22, 1
      %s28 = ssub.s32 %s22, 2
      %s35 = sadd.s32 1, %s30
      %p36 = scmp.ge.s32.totalorder %s35, 2
      %s37 = scalar_select %p36, 0, %s35
      %s38 = sadd.s32 1, %s29
      %s39 = scalar_select %p36, %s38, %s29
      %p40 = scmp.ge.s32.totalorder %s39, 1
      %s41 = scalar_select %p40, 0, %s39
      %s42 = ssub.s32 %s30, %s37
      %p43 = scmp.eq.s32.totalorder %s42, 0
      %s45 = sadd.s32 %s44, 1
      %s46 = scalar_select %p43, %s44, %s45
      %p49 = pneg %p43
      %p50 = scmp.eq.s32.totalorder %s22, 1
      %p51 = por %p49, %p50
      %p52 = scmp.ne.s32.totalorder %s44, %s47
      %p53 = scmp.eq.s32.totalorder %s22, 0
      %p54 = por %p52, %p53
      %p55 = scmp.ne.s32.totalorder %s44, %s47
      %p56 = scmp.eq.s32.totalorder %s27, 1
      %p57 = por %p55, %p56
      %p58 = scmp.ne.s32.totalorder %s47, %s48
      %p59 = scmp.eq.s32.totalorder %s27, 0
      %p60 = por %p58, %p59
      %p61 = scmp.ne.s32.totalorder %s47, %s48
      %p62 = scmp.eq.s32.totalorder %s28, 1
      %p63 = por %p61, %p62
      %p65 = scmp.ne.s32.totalorder %s48, %s64
      %p66 = scmp.eq.s32.totalorder %s28, 0
      %p67 = por %p65, %p66
      %s69 = sadd.s32 %s68, 1
      %p72 = scmp.eq.s32.totalorder %s22, 1
      %p73 = scmp.ne.s32.totalorder %s68, %s70
      %p74 = scmp.eq.s32.totalorder %s22, 0
      %p75 = por %p73, %p74
      %p76 = scmp.ne.s32.totalorder %s68, %s70
      %p77 = scmp.eq.s32.totalorder %s27, 1
      %p78 = por %p76, %p77
      %p79 = scmp.ne.s32.totalorder %s70, %s71
      %p80 = scmp.eq.s32.totalorder %s27, 0
      %p81 = por %p79, %p80
      %p82 = scmp.ne.s32.totalorder %s70, %s71
      %p83 = scmp.eq.s32.totalorder %s28, 1
      %p84 = por %p82, %p83
      %p86 = scmp.ne.s32.totalorder %s71, %s85
      %p87 = scmp.eq.s32.totalorder %s28, 0
      %p88 = por %p86, %p87
      %s90 = sadd.s32 %s89, 1
      %p93 = scmp.eq.s32.totalorder %s22, 1
      %p94 = scmp.ne.s32.totalorder %s89, %s91
      %p95 = scmp.eq.s32.totalorder %s22, 0
      %p96 = por %p94, %p95
      %p97 = scmp.ne.s32.totalorder %s89, %s91
      %p98 = scmp.eq.s32.totalorder %s27, 1
      %p99 = por %p97, %p98
      %p100 = scmp.ne.s32.totalorder %s91, %s92
      %p101 = scmp.eq.s32.totalorder %s27, 0
      %p102 = por %p100, %p101
      %p103 = scmp.ne.s32.totalorder %s91, %s92
      %p104 = scmp.eq.s32.totalorder %s28, 1
      %p105 = por %p103, %p104
      %p107 = scmp.ne.s32.totalorder %s92, %s106
      %p108 = scmp.eq.s32.totalorder %s28, 0
      %p109 = por %p107, %p108
      %s110 = ssub.s32 %s29, %s41
      %p111 = scmp.eq.s32.totalorder %s110, 0
      %s113 = sadd.s32 %s112, 1
      %s114 = scalar_select %p111, %s112, %s113
      %p117 = pneg %p111
      %p118 = scmp.eq.s32.totalorder %s22, 1
      %p119 = por %p117, %p118
      %p120 = scmp.ne.s32.totalorder %s112, %s115
      %p121 = scmp.eq.s32.totalorder %s22, 0
      %p122 = por %p120, %p121
      %p123 = scmp.ne.s32.totalorder %s112, %s115
      %p124 = scmp.eq.s32.totalorder %s27, 1
      %p125 = por %p123, %p124
      %p126 = scmp.ne.s32.totalorder %s115, %s116
      %p127 = scmp.eq.s32.totalorder %s27, 0
      %p128 = por %p126, %p127
      %p129 = scmp.ne.s32.totalorder %s115, %s116
      %p130 = scmp.eq.s32.totalorder %s28, 1
      %p131 = por %p129, %p130
      %p133 = scmp.ne.s32.totalorder %s116, %s132
      %p134 = scmp.eq.s32.totalorder %s28, 0
      %p135 = por %p133, %p134
      %s136 = ssub.s32 %s30, %s37
      %s137 = ssub.s32 %s29, %s41
      %s138 = sor.u32 %s136, %s137
      %p139 = scmp.eq.s32.totalorder %s138, 0
      %s141 = sadd.s32 %s140, 1
      %s142 = scalar_select %p139, %s140, %s141
      %p145 = pneg %p139
      %p146 = scmp.eq.s32.totalorder %s22, 1
      %p147 = por %p145, %p146
      %p148 = scmp.ne.s32.totalorder %s140, %s143
      %p149 = scmp.eq.s32.totalorder %s22, 0
      %p150 = por %p148, %p149
      %p151 = scmp.ne.s32.totalorder %s140, %s143
      %p152 = scmp.eq.s32.totalorder %s27, 1
      %p153 = por %p151, %p152
      %p154 = scmp.ne.s32.totalorder %s143, %s144
      %p155 = scmp.eq.s32.totalorder %s27, 0
      %p156 = por %p154, %p155
      %p157 = scmp.ne.s32.totalorder %s143, %s144
      %p158 = scmp.eq.s32.totalorder %s28, 1
      %p159 = por %p157, %p158
      %p161 = scmp.ne.s32.totalorder %s144, %s160
      %p162 = scmp.eq.s32.totalorder %s28, 0
      %p163 = por %p161, %p162
      %s164 = ssub.s32 %s30, %s37
      %s165 = ssub.s32 %s29, %s41
      %s166 = sor.u32 %s164, %s165
      %p167 = scmp.eq.s32.totalorder %s166, 0
      %s169 = sadd.s32 %s168, 1
      %s170 = scalar_select %p167, %s168, %s169
      %p173 = pneg %p167
      %p174 = scmp.eq.s32.totalorder %s22, 1
      %p175 = por %p173, %p174
      %p176 = scmp.ne.s32.totalorder %s168, %s171
      %p177 = scmp.eq.s32.totalorder %s22, 0
      %p178 = por %p176, %p177
      %p179 = scmp.ne.s32.totalorder %s168, %s171
      %p180 = scmp.eq.s32.totalorder %s27, 1
      %p181 = por %p179, %p180
      %p182 = scmp.ne.s32.totalorder %s171, %s172
      %p183 = scmp.eq.s32.totalorder %s27, 0
      %p184 = por %p182, %p183
      %p185 = scmp.ne.s32.totalorder %s171, %s172
      %p186 = scmp.eq.s32.totalorder %s28, 1
      %p187 = por %p185, %p186
      %p189 = scmp.ne.s32.totalorder %s172, %s188
      %p190 = scmp.eq.s32.totalorder %s28, 0
      %p191 = por %p189, %p190
      %p192 = scmp.le.s32.totalorder 1, %s22
      %p193 = scmp.lt.s32.totalorder %s22, 3
      %p194 = pnand %p192, %p193
      %p195 = pneg %p194
      // Predicated region
      $region9: #{tpu_custom_call.1} parent=5 // pred_check
        _
      $region10: #{tpu_custom_call.1} parent=5 // pred_check_branch
        %197 = sbr.rel (%p194) target = $region12
      $region11: #{tpu_custom_call.1} parent=5 // pred_region
        %s198 = ssub.s32 %s22, 1
        // Predicated region
        $region13: #{tpu_custom_call.1} parent=11 // pred_check
          %p199 = pneg %p81
        $region14: #{tpu_custom_call.1} parent=11 // pred_check_branch
          %201 = sbr.rel (%p199) target = $region16
        $region15: #{tpu_custom_call.1} parent=11 // pred_region
          %203 = vsyncadd [#allocation7], 0
          %s205 = sshll.u32 %s1, 4
          %s206 = int_to_ptr.hbm [resolvable:$true] %s205
          %s207 = sshll.u32 [#allocation6], 4
          %s208 = int_to_ptr.vmem [resolvable:$true] %s207
          %210 = dma.hbm_to_vmem [thread:$0]  %s206, 16, %s208, [#allocation7]
        $region16: #{tpu_custom_call.1} parent=11 // pred_fallthru
          _
        // Predicated region
        $region17: #{tpu_custom_call.1} parent=11 // pred_check
          %p211 = pneg %p102
        $region18: #{tpu_custom_call.1} parent=11 // pred_check_branch
          %213 = sbr.rel (%p211) target = $region20
        $region19: #{tpu_custom_call.1} parent=11 // pred_region
          _
        $region20: #{tpu_custom_call.1} parent=11 // pred_fallthru
          _
        // Predicated region
        $region21: #{tpu_custom_call.1} parent=11 // pred_check
          %p214 = pneg %p128
        $region22: #{tpu_custom_call.1} parent=11 // pred_check_branch
          %216 = sbr.rel (%p214) target = $region24
        $region23: #{tpu_custom_call.1} parent=11 // pred_region
          %218 = vsyncadd [#allocation7], 0
          %s219 = smul.addr %s31, 4
          %s220 = scalar_lea.hbm %s3, %s219
          %s221 = sshll.u32 %s220, 4
          %s222 = int_to_ptr.hbm [resolvable:$true] %s221
          %s223 = sshll.u32 [#allocation8], 4
          %s224 = int_to_ptr.vmem [resolvable:$true] %s223
          %229 = dma.hbm_to_vmem [thread:$0]  %s222, 1024, %s224, [#allocation7], 64, 64, 4
        $region24: #{tpu_custom_call.1} parent=11 // pred_fallthru
          _
      $region12: #{tpu_custom_call.1} parent=5 // pred_fallthru
        _
      %p230 = scmp.lt.s32.totalorder %s22, 2
      // Predicated region
      $region25: #{tpu_custom_call.1} parent=5 // pred_check
        %p231 = pneg %p230
      $region26: #{tpu_custom_call.1} parent=5 // pred_check_branch
        %233 = sbr.rel (%p231) target = $region28
      $region27: #{tpu_custom_call.1} parent=5 // pred_region
        // Predicated region
        $region29: #{tpu_custom_call.1} parent=27 // pred_check
          %p234 = pneg %p54
        $region30: #{tpu_custom_call.1} parent=27 // pred_check_branch
          %236 = sbr.rel (%p234) target = $region32
        $region31: #{tpu_custom_call.1} parent=27 // pred_region
          %s237 = sand.u32 %s44, 1
          %s238 = scalar_lea.sflag [#allocation4], %s237
          %s239 = sand.u32 %s44, 1
          %s240 = smul.addr %s239, 128
          %s241 = scalar_lea.vmem [#allocation3], %s240
          %243 = vsyncadd %s238, 0
          %s244 = smul.addr %s30, 32
          %s245 = smul.addr %s244, 4
          %s246 = scalar_lea.hbm %s0, %s245
          %s247 = sshll.u32 %s246, 4
          %s248 = int_to_ptr.hbm [resolvable:$true] %s247
          %s249 = sshll.u32 %s241, 4
          %s250 = int_to_ptr.vmem [resolvable:$true] %s249
          %255 = dma.hbm_to_vmem [thread:$0]  %s248, 2048, %s250, %s238, 64, 64, 4
        $region32: #{tpu_custom_call.1} parent=27 // pred_fallthru
          _
      $region28: #{tpu_custom_call.1} parent=5 // pred_fallthru
        _
      %p256 = scmp.le.s32.totalorder 1, %s22
      %p257 = scmp.lt.s32.totalorder %s22, 3
      %p258 = pnand %p256, %p257
      %p259 = pneg %p258
      // Predicated region
      $region33: #{tpu_custom_call.1} parent=5 // pred_check
        _
      $region34: #{tpu_custom_call.1} parent=5 // pred_check_branch
        %261 = sbr.rel (%p258) target = $region36
      $region35: #{tpu_custom_call.1} parent=5 // pred_region
        %s262 = ssub.s32 %s22, 1
        %s263 = sand.u32 %s47, 1
        %s264 = scalar_lea.sflag [#allocation4], %s263
        %s265 = sand.u32 %s47, 1
        %s266 = smul.addr %s265, 128
        %s267 = scalar_lea.vmem [#allocation3], %s266
        // Predicated region
        $region37: #{tpu_custom_call.1} parent=35 // pred_check
          %p268 = pneg %p60
        $region38: #{tpu_custom_call.1} parent=35 // pred_check_branch
          %270 = sbr.rel (%p268) target = $region40
        $region39: #{tpu_custom_call.1} parent=35 // pred_region
          %272 = dma.done %s264, 2048
        $region40: #{tpu_custom_call.1} parent=35 // pred_fallthru
          _
        // Predicated region
        $region41: #{tpu_custom_call.1} parent=35 // pred_check
          %p273 = pneg %p81
        $region42: #{tpu_custom_call.1} parent=35 // pred_check_branch
          %275 = sbr.rel (%p273) target = $region44
        $region43: #{tpu_custom_call.1} parent=35 // pred_region
          %277 = dma.done [#allocation7], 16
        $region44: #{tpu_custom_call.1} parent=35 // pred_fallthru
          _
        // Predicated region
        $region45: #{tpu_custom_call.1} parent=35 // pred_check
          %p278 = pneg %p128
        $region46: #{tpu_custom_call.1} parent=35 // pred_check_branch
          %280 = sbr.rel (%p278) target = $region48
        $region47: #{tpu_custom_call.1} parent=35 // pred_region
          %282 = dma.done [#allocation7], 1024
        $region48: #{tpu_custom_call.1} parent=35 // pred_fallthru
          _
        %s283 = sand.u32 %s47, 1
        %s284 = scalar_lea.sflag [#allocation4], %s283
        %s285 = sand.u32 %s47, 1
        %s286 = smul.addr %s285, 128
        %s287 = scalar_lea.vmem [#allocation3], %s286
        %p288 = pneg %p60
        %p289 = pneg %p57
        %p290 = pneg %p81
        %p291 = pneg %p78
        %p292 = pneg %p102
        %p293 = pneg %p99
        %p294 = pneg %p128
        %p295 = pneg %p125
        %p296 = pneg %p156
        %p297 = pneg %p153
        %s298 = sand.u32 %s143, 1
        %s299 = scalar_lea.sflag [#allocation5], %s298
        %s300 = sand.u32 %s143, 1
        %s301 = smul.addr %s300, 128
        %s302 = scalar_lea.vmem [#allocation9], %s301
        %p303 = pneg %p184
        %p304 = pneg %p181
        %s305 = sand.u32 %s171, 1
        %s306 = scalar_lea.sflag [#allocation11], %s305
        %s307 = sand.u32 %s171, 1
        %s308 = smul.addr %s307, 8
        %s309 = scalar_lea.vmem [#allocation10], %s308
        %v310 = vld [vmem:[%s267] sm:$0xf]
        %v311 = vld [vmem:[%s267 + $0x4] sm:$0xf]
        %v312 = vld [vmem:[%s267 + $0x8] sm:$0xf]
        %v313 = vld [vmem:[%s267 + $0xc] sm:$0xf]
        %v314 = vld [vmem:[%s267 + $0x10] sm:$0xf]
        %v315 = vld [vmem:[%s267 + $0x14] sm:$0xf]
        %v316 = vld [vmem:[%s267 + $0x18] sm:$0xf]
        %v317 = vld [vmem:[%s267 + $0x1c] sm:$0xf]
        %v318 = vld [vmem:[%s267 + $0x20] sm:$0xf]
        %v319 = vld [vmem:[%s267 + $0x24] sm:$0xf]
        %v320 = vld [vmem:[%s267 + $0x28] sm:$0xf]
        %v321 = vld [vmem:[%s267 + $0x2c] sm:$0xf]
        %v322 = vld [vmem:[%s267 + $0x30] sm:$0xf]
        %v323 = vld [vmem:[%s267 + $0x34] sm:$0xf]
        %v324 = vld [vmem:[%s267 + $0x38] sm:$0xf]
        %v325 = vld [vmem:[%s267 + $0x3c] sm:$0xf]
        %v326 = vld [vmem:[%s267 + $0x40] sm:$0xf]
        %v327 = vld [vmem:[%s267 + $0x44] sm:$0xf]
        %v328 = vld [vmem:[%s267 + $0x48] sm:$0xf]
        %v329 = vld [vmem:[%s267 + $0x4c] sm:$0xf]
        %v330 = vld [vmem:[%s267 + $0x50] sm:$0xf]
        %v331 = vld [vmem:[%s267 + $0x54] sm:$0xf]
        %v332 = vld [vmem:[%s267 + $0x58] sm:$0xf]
        %v333 = vld [vmem:[%s267 + $0x5c] sm:$0xf]
        %v334 = vld [vmem:[%s267 + $0x60] sm:$0xf]
        %v335 = vld [vmem:[%s267 + $0x64] sm:$0xf]
        %v336 = vld [vmem:[%s267 + $0x68] sm:$0xf]
        %v337 = vld [vmem:[%s267 + $0x6c] sm:$0xf]
        %v338 = vld [vmem:[%s267 + $0x70] sm:$0xf]
        %v339 = vld [vmem:[%s267 + $0x74] sm:$0xf]
        %v340 = vld [vmem:[%s267 + $0x78] sm:$0xf]
        %v341 = vld [vmem:[%s267 + $0x7c] sm:$0xf]
        %v342 = vld [vmem:[#allocation8] sm:$0xf]
        %v343 = vld [vmem:[#allocation8 + $0x4] sm:$0xf]
        %v344 = vld [vmem:[#allocation8 + $0x8] sm:$0xf]
        %v345 = vld [vmem:[#allocation8 + $0xc] sm:$0xf]
        %v346 = vld [vmem:[#allocation8 + $0x10] sm:$0xf]
        %v347 = vld [vmem:[#allocation8 + $0x14] sm:$0xf]
        %v348 = vld [vmem:[#allocation8 + $0x18] sm:$0xf]
        %v349 = vld [vmem:[#allocation8 + $0x1c] sm:$0xf]
        %v350 = vld [vmem:[#allocation8 + $0x20] sm:$0xf]
        %v351 = vld [vmem:[#allocation8 + $0x24] sm:$0xf]
        %v352 = vld [vmem:[#allocation8 + $0x28] sm:$0xf]
        %v353 = vld [vmem:[#allocation8 + $0x2c] sm:$0xf]
        %v354 = vld [vmem:[#allocation8 + $0x30] sm:$0xf]
        %v355 = vld [vmem:[#allocation8 + $0x34] sm:$0xf]
        %v356 = vld [vmem:[#allocation8 + $0x38] sm:$0xf]
        %v357 = vld [vmem:[#allocation8 + $0x3c] sm:$0xf]
        %v390 = vunpack.c.l.b16 %v310
        %v391 = vunpack.c.l.b16 %v311
        %v392 = vunpack.c.l.b16 %v312
        %v393 = vunpack.c.l.b16 %v313
        %v394 = vunpack.c.l.b16 %v314
        %v395 = vunpack.c.l.b16 %v315
        %v396 = vunpack.c.l.b16 %v316
        %v397 = vunpack.c.l.b16 %v317
        %v398 = vunpack.c.l.b16 %v318
        %v399 = vunpack.c.l.b16 %v319
        %v400 = vunpack.c.l.b16 %v320
        %v401 = vunpack.c.l.b16 %v321
        %v402 = vunpack.c.l.b16 %v322
        %v403 = vunpack.c.l.b16 %v323
        %v404 = vunpack.c.l.b16 %v324
        %v405 = vunpack.c.l.b16 %v325
        %v406 = vunpack.c.l.b16 %v326
        %v407 = vunpack.c.l.b16 %v327
        %v408 = vunpack.c.l.b16 %v328
        %v409 = vunpack.c.l.b16 %v329
        %v410 = vunpack.c.l.b16 %v330
        %v411 = vunpack.c.l.b16 %v331
        %v412 = vunpack.c.l.b16 %v332
        %v413 = vunpack.c.l.b16 %v333
        %v414 = vunpack.c.l.b16 %v334
        %v415 = vunpack.c.l.b16 %v335
        %v416 = vunpack.c.l.b16 %v336
        %v417 = vunpack.c.l.b16 %v337
        %v418 = vunpack.c.l.b16 %v338
        %v419 = vunpack.c.l.b16 %v339
        %v420 = vunpack.c.l.b16 %v340
        %v421 = vunpack.c.l.b16 %v341
        %v422 = vpack.c.b16 %v391, %v390
        %v423 = vpack.c.b16 %v393, %v392
        %v424 = vpack.c.b16 %v395, %v394
        %v425 = vpack.c.b16 %v397, %v396
        %v426 = vpack.c.b16 %v399, %v398
        %v427 = vpack.c.b16 %v401, %v400
        %v428 = vpack.c.b16 %v403, %v402
        %v429 = vpack.c.b16 %v405, %v404
        %v430 = vpack.c.b16 %v407, %v406
        %v431 = vpack.c.b16 %v409, %v408
        %v432 = vpack.c.b16 %v411, %v410
        %v433 = vpack.c.b16 %v413, %v412
        %v434 = vpack.c.b16 %v415, %v414
        %v435 = vpack.c.b16 %v417, %v416
        %v436 = vpack.c.b16 %v419, %v418
        %v437 = vpack.c.b16 %v421, %v420
        %v470 = vunpack.c.l.b16 %v342
        %v471 = vunpack.c.l.b16 %v343
        %v472 = vunpack.c.l.b16 %v344
        %v473 = vunpack.c.l.b16 %v345
        %v474 = vunpack.c.l.b16 %v346
        %v475 = vunpack.c.l.b16 %v347
        %v476 = vunpack.c.l.b16 %v348
        %v477 = vunpack.c.l.b16 %v349
        %v478 = vunpack.c.l.b16 %v350
        %v479 = vunpack.c.l.b16 %v351
        %v480 = vunpack.c.l.b16 %v352
        %v481 = vunpack.c.l.b16 %v353
        %v482 = vunpack.c.l.b16 %v354
        %v483 = vunpack.c.l.b16 %v355
        %v484 = vunpack.c.l.b16 %v356
        %v485 = vunpack.c.l.b16 %v357
        %v486 = vpack.c.b16 %v471, %v470
        %v487 = vpack.c.b16 %v473, %v472
        %v488 = vpack.c.b16 %v475, %v474
        %v489 = vpack.c.b16 %v477, %v476
        %v490 = vpack.c.b16 %v479, %v478
        %v491 = vpack.c.b16 %v481, %v480
        %v492 = vpack.c.b16 %v483, %v482
        %v493 = vpack.c.b16 %v485, %v484
        %502 = vmatpush.bf16.msra.mxu0 %v493
        %503 = vmatpush.bf16.msra.mxu0 %v492
        %504 = vmatpush.bf16.msra.mxu0 %v491
        %505 = vmatpush.bf16.msra.mxu0 %v490
        %506 = vmatpush.bf16.msra.mxu0 %v489
        %507 = vmatpush.bf16.msra.mxu0 %v488
        %508 = vmatpush.bf16.msra.mxu0 %v487
        %509 = vmatpush.bf16.msra.mxu0 %v486
        %510 = vmatmul.bf16.gmra.mxu0 %v422
        %v511 = vpop.f32.mrf.mxu0
        %v512 = vadd.f32 0.0, %v511
        %v513 = vpop.f32.mrf.mxu0
        %v514 = vadd.f32 0.0, %v513
        %515 = vmatmul.bf16.gmra.mxu0 %v423
        %v516 = vpop.f32.mrf.mxu0
        %v517 = vadd.f32 0.0, %v516
        %v518 = vpop.f32.mrf.mxu0
        %v519 = vadd.f32 0.0, %v518
        %520 = vmatmul.bf16.gmra.mxu0 %v424
        %v521 = vpop.f32.mrf.mxu0
        %v522 = vadd.f32 0.0, %v521
        %v523 = vpop.f32.mrf.mxu0
        %v524 = vadd.f32 0.0, %v523
        %525 = vmatmul.bf16.gmra.mxu0 %v425
        %v526 = vpop.f32.mrf.mxu0
        %v527 = vadd.f32 0.0, %v526
        %v528 = vpop.f32.mrf.mxu0
        %v529 = vadd.f32 0.0, %v528
        %530 = vmatmul.bf16.gmra.mxu0 %v426
        %v531 = vpop.f32.mrf.mxu0
        %v532 = vadd.f32 0.0, %v531
        %v533 = vpop.f32.mrf.mxu0
        %v534 = vadd.f32 0.0, %v533
        %535 = vmatmul.bf16.gmra.mxu0 %v427
        %v536 = vpop.f32.mrf.mxu0
        %v537 = vadd.f32 0.0, %v536
        %v538 = vpop.f32.mrf.mxu0
        %v539 = vadd.f32 0.0, %v538
        %540 = vmatmul.bf16.gmra.mxu0 %v428
        %v541 = vpop.f32.mrf.mxu0
        %v542 = vadd.f32 0.0, %v541
        %v543 = vpop.f32.mrf.mxu0
        %v544 = vadd.f32 0.0, %v543
        %545 = vmatmul.bf16.gmra.mxu0 %v429
        %v546 = vpop.f32.mrf.mxu0
        %v547 = vadd.f32 0.0, %v546
        %v548 = vpop.f32.mrf.mxu0
        %v549 = vadd.f32 0.0, %v548
        %550 = vmatmul.bf16.gmra.mxu0 %v430
        %v551 = vpop.f32.mrf.mxu0
        %v552 = vadd.f32 0.0, %v551
        %v553 = vpop.f32.mrf.mxu0
        %v554 = vadd.f32 0.0, %v553
        %555 = vmatmul.bf16.gmra.mxu0 %v431
        %v556 = vpop.f32.mrf.mxu0
        %v557 = vadd.f32 0.0, %v556
        %v558 = vpop.f32.mrf.mxu0
        %v559 = vadd.f32 0.0, %v558
        %560 = vmatmul.bf16.gmra.mxu0 %v432
        %v561 = vpop.f32.mrf.mxu0
        %v562 = vadd.f32 0.0, %v561
        %v563 = vpop.f32.mrf.mxu0
        %v564 = vadd.f32 0.0, %v563
        %565 = vmatmul.bf16.gmra.mxu0 %v433
        %v566 = vpop.f32.mrf.mxu0
        %v567 = vadd.f32 0.0, %v566
        %v568 = vpop.f32.mrf.mxu0
        %v569 = vadd.f32 0.0, %v568
        %570 = vmatmul.bf16.gmra.mxu0 %v434
        %v571 = vpop.f32.mrf.mxu0
        %v572 = vadd.f32 0.0, %v571
        %v573 = vpop.f32.mrf.mxu0
        %v574 = vadd.f32 0.0, %v573
        %575 = vmatmul.bf16.gmra.mxu0 %v435
        %v576 = vpop.f32.mrf.mxu0
        %v577 = vadd.f32 0.0, %v576
        %v578 = vpop.f32.mrf.mxu0
        %v579 = vadd.f32 0.0, %v578
        %580 = vmatmul.bf16.gmra.mxu0 %v436
        %v581 = vpop.f32.mrf.mxu0
        %v582 = vadd.f32 0.0, %v581
        %v583 = vpop.f32.mrf.mxu0
        %v584 = vadd.f32 0.0, %v583
        %585 = vmatmul.bf16.gmra.mxu0 %v437
        %v586 = vpop.f32.mrf.mxu0
        %v587 = vadd.f32 0.0, %v586
        %v588 = vpop.f32.mrf.mxu0
        %v589 = vadd.f32 0.0, %v588
        %590 = vdwg.mxu0
        %591 = vst [vmem:[#allocation2] sm:$0xff] %v512
        %592 = vst [vmem:[#allocation2 + $0x8] sm:$0xff] %v514
        %593 = vst [vmem:[#allocation2 + $0x10] sm:$0xff] %v517
        %594 = vst [vmem:[#allocation2 + $0x18] sm:$0xff] %v519
        %595 = vst [vmem:[#allocation2 + $0x20] sm:$0xff] %v522
        %596 = vst [vmem:[#allocation2 + $0x28] sm:$0xff] %v524
        %597 = vst [vmem:[#allocation2 + $0x30] sm:$0xff] %v527
        %598 = vst [vmem:[#allocation2 + $0x38] sm:$0xff] %v529
        %599 = vst [vmem:[#allocation2 + $0x40] sm:$0xff] %v532
        %600 = vst [vmem:[#allocation2 + $0x48] sm:$0xff] %v534
        %601 = vst [vmem:[#allocation2 + $0x50] sm:$0xff] %v537
        %602 = vst [vmem:[#allocation2 + $0x58] sm:$0xff] %v539
        %603 = vst [vmem:[#allocation2 + $0x60] sm:$0xff] %v542
        %604 = vst [vmem:[#allocation2 + $0x68] sm:$0xff] %v544
        %605 = vst [vmem:[#allocation2 + $0x70] sm:$0xff] %v547
        %606 = vst [vmem:[#allocation2 + $0x78] sm:$0xff] %v549
        %607 = vst [vmem:[#allocation2 + $0x80] sm:$0xff] %v552
        %608 = vst [vmem:[#allocation2 + $0x88] sm:$0xff] %v554
        %609 = vst [vmem:[#allocation2 + $0x90] sm:$0xff] %v557
        %610 = vst [vmem:[#allocation2 + $0x98] sm:$0xff] %v559
        %611 = vst [vmem:[#allocation2 + $0xa0] sm:$0xff] %v562
        %612 = vst [vmem:[#allocation2 + $0xa8] sm:$0xff] %v564
        %613 = vst [vmem:[#allocation2 + $0xb0] sm:$0xff] %v567
        %614 = vst [vmem:[#allocation2 + $0xb8] sm:$0xff] %v569
        %615 = vst [vmem:[#allocation2 + $0xc0] sm:$0xff] %v572
        %616 = vst [vmem:[#allocation2 + $0xc8] sm:$0xff] %v574
        %617 = vst [vmem:[#allocation2 + $0xd0] sm:$0xff] %v577
        %618 = vst [vmem:[#allocation2 + $0xd8] sm:$0xff] %v579
        %619 = vst [vmem:[#allocation2 + $0xe0] sm:$0xff] %v582
        %620 = vst [vmem:[#allocation2 + $0xe8] sm:$0xff] %v584
        %621 = vst [vmem:[#allocation2 + $0xf0] sm:$0xff] %v587
        %622 = vst [vmem:[#allocation2 + $0xf8] sm:$0xff] %v589
        %v623 = vld [vmem:[#allocation2] sm:$0xff]
        %v624 = vld [vmem:[#allocation2 + $0x8] sm:$0xff]
        %v625 = vld [vmem:[#allocation2 + $0x10] sm:$0xff]
        %v626 = vld [vmem:[#allocation2 + $0x18] sm:$0xff]
        %v627 = vld [vmem:[#allocation2 + $0x20] sm:$0xff]
        %v628 = vld [vmem:[#allocation2 + $0x28] sm:$0xff]
        %v629 = vld [vmem:[#allocation2 + $0x30] sm:$0xff]
        %v630 = vld [vmem:[#allocation2 + $0x38] sm:$0xff]
        %v631 = vld [vmem:[#allocation2 + $0x40] sm:$0xff]
        %v632 = vld [vmem:[#allocation2 + $0x48] sm:$0xff]
        %v633 = vld [vmem:[#allocation2 + $0x50] sm:$0xff]
        %v634 = vld [vmem:[#allocation2 + $0x58] sm:$0xff]
        %v635 = vld [vmem:[#allocation2 + $0x60] sm:$0xff]
        %v636 = vld [vmem:[#allocation2 + $0x68] sm:$0xff]
        %v637 = vld [vmem:[#allocation2 + $0x70] sm:$0xff]
        %v638 = vld [vmem:[#allocation2 + $0x78] sm:$0xff]
        %v639 = vld [vmem:[#allocation2 + $0x80] sm:$0xff]
        %v640 = vld [vmem:[#allocation2 + $0x88] sm:$0xff]
        %v641 = vld [vmem:[#allocation2 + $0x90] sm:$0xff]
        %v642 = vld [vmem:[#allocation2 + $0x98] sm:$0xff]
        %v643 = vld [vmem:[#allocation2 + $0xa0] sm:$0xff]
        %v644 = vld [vmem:[#allocation2 + $0xa8] sm:$0xff]
        %v645 = vld [vmem:[#allocation2 + $0xb0] sm:$0xff]
        %v646 = vld [vmem:[#allocation2 + $0xb8] sm:$0xff]
        %v647 = vld [vmem:[#allocation2 + $0xc0] sm:$0xff]
        %v648 = vld [vmem:[#allocation2 + $0xc8] sm:$0xff]
        %v649 = vld [vmem:[#allocation2 + $0xd0] sm:$0xff]
        %v650 = vld [vmem:[#allocation2 + $0xd8] sm:$0xff]
        %v651 = vld [vmem:[#allocation2 + $0xe0] sm:$0xff]
        %v652 = vld [vmem:[#allocation2 + $0xe8] sm:$0xff]
        %v653 = vld [vmem:[#allocation2 + $0xf0] sm:$0xff]
        %v654 = vld [vmem:[#allocation2 + $0xf8] sm:$0xff]
        %v655 = vpack.c.bf16 %v623, %v623
        %v656 = vpack.c.bf16 %v624, %v624
        %v657 = vpack.c.bf16 %v625, %v625
        %v658 = vpack.c.bf16 %v626, %v626
        %v659 = vpack.c.bf16 %v627, %v627
        %v660 = vpack.c.bf16 %v628, %v628
        %v661 = vpack.c.bf16 %v629, %v629
        %v662 = vpack.c.bf16 %v630, %v630
        %v663 = vpack.c.bf16 %v631, %v631
        %v664 = vpack.c.bf16 %v632, %v632
        %v665 = vpack.c.bf16 %v633, %v633
        %v666 = vpack.c.bf16 %v634, %v634
        %v667 = vpack.c.bf16 %v635, %v635
        %v668 = vpack.c.bf16 %v636, %v636
        %v669 = vpack.c.bf16 %v637, %v637
        %v670 = vpack.c.bf16 %v638, %v638
        %v671 = vpack.c.bf16 %v639, %v639
        %v672 = vpack.c.bf16 %v640, %v640
        %v673 = vpack.c.bf16 %v641, %v641
        %v674 = vpack.c.bf16 %v642, %v642
        %v675 = vpack.c.bf16 %v643, %v643
        %v676 = vpack.c.bf16 %v644, %v644
        %v677 = vpack.c.bf16 %v645, %v645
        %v678 = vpack.c.bf16 %v646, %v646
        %v679 = vpack.c.bf16 %v647, %v647
        %v680 = vpack.c.bf16 %v648, %v648
        %v681 = vpack.c.bf16 %v649, %v649
        %v682 = vpack.c.bf16 %v650, %v650
        %v683 = vpack.c.bf16 %v651, %v651
        %v684 = vpack.c.bf16 %v652, %v652
        %v685 = vpack.c.bf16 %v653, %v653
        %v686 = vpack.c.bf16 %v654, %v654
        %687 = vst [vmem:[%s302] sm:$0xf] %v655
        %688 = vst [vmem:[%s302 + $0x4] sm:$0xf] %v656
        %689 = vst [vmem:[%s302 + $0x8] sm:$0xf] %v657
        %690 = vst [vmem:[%s302 + $0xc] sm:$0xf] %v658
        %691 = vst [vmem:[%s302 + $0x10] sm:$0xf] %v659
        %692 = vst [vmem:[%s302 + $0x14] sm:$0xf] %v660
        %693 = vst [vmem:[%s302 + $0x18] sm:$0xf] %v661
        %694 = vst [vmem:[%s302 + $0x1c] sm:$0xf] %v662
        %695 = vst [vmem:[%s302 + $0x20] sm:$0xf] %v663
        %696 = vst [vmem:[%s302 + $0x24] sm:$0xf] %v664
        %697 = vst [vmem:[%s302 + $0x28] sm:$0xf] %v665
        %698 = vst [vmem:[%s302 + $0x2c] sm:$0xf] %v666
        %699 = vst [vmem:[%s302 + $0x30] sm:$0xf] %v667
        %700 = vst [vmem:[%s302 + $0x34] sm:$0xf] %v668
        %701 = vst [vmem:[%s302 + $0x38] sm:$0xf] %v669
        %702 = vst [vmem:[%s302 + $0x3c] sm:$0xf] %v670
        %703 = vst [vmem:[%s302 + $0x40] sm:$0xf] %v671
        %704 = vst [vmem:[%s302 + $0x44] sm:$0xf] %v672
        %705 = vst [vmem:[%s302 + $0x48] sm:$0xf] %v673
        %706 = vst [vmem:[%s302 + $0x4c] sm:$0xf] %v674
        %707 = vst [vmem:[%s302 + $0x50] sm:$0xf] %v675
        %708 = vst [vmem:[%s302 + $0x54] sm:$0xf] %v676
        %709 = vst [vmem:[%s302 + $0x58] sm:$0xf] %v677
        %710 = vst [vmem:[%s302 + $0x5c] sm:$0xf] %v678
        %711 = vst [vmem:[%s302 + $0x60] sm:$0xf] %v679
        %712 = vst [vmem:[%s302 + $0x64] sm:$0xf] %v680
        %713 = vst [vmem:[%s302 + $0x68] sm:$0xf] %v681
        %714 = vst [vmem:[%s302 + $0x6c] sm:$0xf] %v682
        %715 = vst [vmem:[%s302 + $0x70] sm:$0xf] %v683
        %716 = vst [vmem:[%s302 + $0x74] sm:$0xf] %v684
        %717 = vst [vmem:[%s302 + $0x78] sm:$0xf] %v685
        %718 = vst [vmem:[%s302 + $0x7c] sm:$0xf] %v686
        %v719 = vadd.f32 %v623, %v624
        %v720 = vadd.f32 %v719, %v625
        %v721 = vadd.f32 %v720, %v626
        %v722 = vadd.f32 %v721, %v627
        %v723 = vadd.f32 %v722, %v628
        %v724 = vadd.f32 %v723, %v629
        %v725 = vadd.f32 %v724, %v630
        %v726 = vadd.f32 %v725, %v631
        %v727 = vadd.f32 %v726, %v632
        %v728 = vadd.f32 %v727, %v633
        %v729 = vadd.f32 %v728, %v634
        %v730 = vadd.f32 %v729, %v635
        %v731 = vadd.f32 %v730, %v636
        %v732 = vadd.f32 %v731, %v637
        %v733 = vadd.f32 %v732, %v638
        %v734 = vadd.f32 %v733, %v639
        %v735 = vadd.f32 %v734, %v640
        %v736 = vadd.f32 %v735, %v641
        %v737 = vadd.f32 %v736, %v642
        %v738 = vadd.f32 %v737, %v643
        %v739 = vadd.f32 %v738, %v644
        %v740 = vadd.f32 %v739, %v645
        %v741 = vadd.f32 %v740, %v646
        %v742 = vadd.f32 %v741, %v647
        %v743 = vadd.f32 %v742, %v648
        %v744 = vadd.f32 %v743, %v649
        %v745 = vadd.f32 %v744, %v650
        %v746 = vadd.f32 %v745, %v651
        %v747 = vadd.f32 %v746, %v652
        %v748 = vadd.f32 %v747, %v653
        %v749 = vadd.f32 %v748, %v654
        %v750 = vrot.slane %v749, 4
        %v751 = vadd.f32 %v749, %v750
        %v752 = vrot.slane %v751, 2
        %v753 = vadd.f32 %v751, %v752
        %v754 = vrot.slane %v753, 1
        %v755 = vadd.f32 %v753, %v754
        %v756 = vmul.f32 %v623, %v623
        %v757 = vmul.f32 %v624, %v624
        %v758 = vmul.f32 %v625, %v625
        %v759 = vmul.f32 %v626, %v626
        %v760 = vmul.f32 %v627, %v627
        %v761 = vmul.f32 %v628, %v628
        %v762 = vmul.f32 %v629, %v629
        %v763 = vmul.f32 %v630, %v630
        %v764 = vmul.f32 %v631, %v631
        %v765 = vmul.f32 %v632, %v632
        %v766 = vmul.f32 %v633, %v633
        %v767 = vmul.f32 %v634, %v634
        %v768 = vmul.f32 %v635, %v635
        %v769 = vmul.f32 %v636, %v636
        %v770 = vmul.f32 %v637, %v637
        %v771 = vmul.f32 %v638, %v638
        %v772 = vmul.f32 %v639, %v639
        %v773 = vmul.f32 %v640, %v640
        %v774 = vmul.f32 %v641, %v641
        %v775 = vmul.f32 %v642, %v642
        %v776 = vmul.f32 %v643, %v643
        %v777 = vmul.f32 %v644, %v644
        %v778 = vmul.f32 %v645, %v645
        %v779 = vmul.f32 %v646, %v646
        %v780 = vmul.f32 %v647, %v647
        %v781 = vmul.f32 %v648, %v648
        %v782 = vmul.f32 %v649, %v649
        %v783 = vmul.f32 %v650, %v650
        %v784 = vmul.f32 %v651, %v651
        %v785 = vmul.f32 %v652, %v652
        %v786 = vmul.f32 %v653, %v653
        %v787 = vmul.f32 %v654, %v654
        %v788 = vadd.f32 %v756, %v757
        %v789 = vadd.f32 %v788, %v758
        %v790 = vadd.f32 %v789, %v759
        %v791 = vadd.f32 %v790, %v760
        %v792 = vadd.f32 %v791, %v761
        %v793 = vadd.f32 %v792, %v762
        %v794 = vadd.f32 %v793, %v763
        %v795 = vadd.f32 %v794, %v764
        %v796 = vadd.f32 %v795, %v765
        %v797 = vadd.f32 %v796, %v766
        %v798 = vadd.f32 %v797, %v767
        %v799 = vadd.f32 %v798, %v768
        %v800 = vadd.f32 %v799, %v769
        %v801 = vadd.f32 %v800, %v770
        %v802 = vadd.f32 %v801, %v771
        %v803 = vadd.f32 %v802, %v772
        %v804 = vadd.f32 %v803, %v773
        %v805 = vadd.f32 %v804, %v774
        %v806 = vadd.f32 %v805, %v775
        %v807 = vadd.f32 %v806, %v776
        %v808 = vadd.f32 %v807, %v777
        %v809 = vadd.f32 %v808, %v778
        %v810 = vadd.f32 %v809, %v779
        %v811 = vadd.f32 %v810, %v780
        %v812 = vadd.f32 %v811, %v781
        %v813 = vadd.f32 %v812, %v782
        %v814 = vadd.f32 %v813, %v783
        %v815 = vadd.f32 %v814, %v784
        %v816 = vadd.f32 %v815, %v785
        %v817 = vadd.f32 %v816, %v786
        %v818 = vadd.f32 %v817, %v787
        %v819 = vrot.slane %v818, 4
        %v820 = vadd.f32 %v818, %v819
        %v821 = vrot.slane %v820, 2
        %v822 = vadd.f32 %v820, %v821
        %v823 = vrot.slane %v822, 1
        %v824 = vadd.f32 %v822, %v823
        %vm825 = vcmask 1040384
        %v826 = vsel %vm825, %v755, %v824
        %vm827 = vcmask 1041408
        %v828 = vsel %vm827, %v826, 0.0
        %829 = vst [vmem:[%s309] sm:$0xff] %v828
        %s830 = sand.u32 %s143, 1
        %s831 = scalar_lea.sflag [#allocation5], %s830
        %s832 = sand.u32 %s143, 1
        %s833 = smul.addr %s832, 128
        %s834 = scalar_lea.vmem [#allocation9], %s833
        %s835 = sand.u32 %s171, 1
        %s836 = scalar_lea.sflag [#allocation11], %s835
        %s837 = sand.u32 %s171, 1
        %s838 = smul.addr %s837, 8
        %s839 = scalar_lea.vmem [#allocation10], %s838
        // Predicated region
        $region49: #{tpu_custom_call.1} parent=35 // pred_check
          %p840 = pneg %p153
        $region50: #{tpu_custom_call.1} parent=35 // pred_check_branch
          %842 = sbr.rel (%p840) target = $region52
        $region51: #{tpu_custom_call.1} parent=35 // pred_region
          %844 = vsyncadd %s831, 0
          %s845 = smul.addr %s32, 32
          %s846 = sadd.s32 %s31, %s845
          %s847 = smul.addr %s846, 4
          %s848 = scalar_lea.hbm %s4, %s847
          %s849 = sshll.u32 %s834, 4
          %s850 = int_to_ptr.vmem [resolvable:$true] %s849
          %s851 = sshll.u32 %s848, 4
          %s852 = int_to_ptr.hbm [resolvable:$true] %s851
          %857 = dma.vmem_to_hbm [thread:$0]  %s850, 2048, %s852, %s831, 64, 64, 4
        $region52: #{tpu_custom_call.1} parent=35 // pred_fallthru
          _
        // Predicated region
        $region53: #{tpu_custom_call.1} parent=35 // pred_check
          %p858 = pneg %p181
        $region54: #{tpu_custom_call.1} parent=35 // pred_check_branch
          %860 = sbr.rel (%p858) target = $region56
        $region55: #{tpu_custom_call.1} parent=35 // pred_region
          %862 = vsyncadd %s836, 0
          %s863 = sadd.s32 %s31, %s32
          %s864 = smul.addr %s863, 8
          %s865 = scalar_lea.hbm %s5, %s864
          %s867 = sshll.u32 %s839, 4
          %s868 = int_to_ptr.vmem [resolvable:$true] %s867
          %s869 = sshll.u32 %s865, 4
          %s870 = int_to_ptr.hbm [resolvable:$true] %s869
          %872 = dma.vmem_to_hbm [thread:$0]  %s868, 128, %s870, %s836
        $region56: #{tpu_custom_call.1} parent=35 // pred_fallthru
          _
      $region36: #{tpu_custom_call.1} parent=5 // pred_fallthru
        _
      %p873 = scmp.le.s32.totalorder 2, %s22
      // Predicated region
      $region57: #{tpu_custom_call.1} parent=5 // pred_check
        %p874 = pneg %p873
      $region58: #{tpu_custom_call.1} parent=5 // pred_check_branch
        %876 = sbr.rel (%p874) target = $region60
      $region59: #{tpu_custom_call.1} parent=5 // pred_region
        %s877 = ssub.s32 %s22, 2
        // Predicated region
        $region61: #{tpu_custom_call.1} parent=59 // pred_check
          %p878 = pneg %p159
        $region62: #{tpu_custom_call.1} parent=59 // pred_check_branch
          %880 = sbr.rel (%p878) target = $region64
        $region63: #{tpu_custom_call.1} parent=59 // pred_region
          %s881 = sand.u32 %s144, 1
          %s882 = scalar_lea.sflag [#allocation5], %s881
          %s883 = sand.u32 %s144, 1
          %s884 = smul.addr %s883, 128
          %s885 = scalar_lea.vmem [#allocation9], %s884
          %887 = dma.done %s882, 2048
        $region64: #{tpu_custom_call.1} parent=59 // pred_fallthru
          _
        // Predicated region
        $region65: #{tpu_custom_call.1} parent=59 // pred_check
          %p888 = pneg %p187
        $region66: #{tpu_custom_call.1} parent=59 // pred_check_branch
          %890 = sbr.rel (%p888) target = $region68
        $region67: #{tpu_custom_call.1} parent=59 // pred_region
          %s891 = sand.u32 %s172, 1
          %s892 = scalar_lea.sflag [#allocation11], %s891
          %s893 = sand.u32 %s172, 1
          %s894 = smul.addr %s893, 8
          %s895 = scalar_lea.vmem [#allocation10], %s894
          %897 = dma.done %s892, 128
        $region68: #{tpu_custom_call.1} parent=59 // pred_fallthru
          _
      $region60: #{tpu_custom_call.1} parent=5 // pred_fallthru
        _
    $region6: #{tpu_custom_call.1} parent=1 // loop_footer
      %s26 = sadd.s32 1, %s22
    $region7: #{tpu_custom_call.1} parent=1 // loop_footer_branch
      %21 = sbr.rel target = $region3
    $region8: #{tpu_custom_call.1} parent=1 // loop_exit
      _
    %898 = vsyncpa [#allocation4], 1
    %s899 = scalar_lea.sflag [#allocation4], 1
    %900 = vsyncpa %s899, 1
    %901 = vsyncpa [#allocation7], 1
    %902 = vsyncpa [#allocation5], 1
    %s903 = scalar_lea.sflag [#allocation5], 1
    %904 = vsyncpa %s903, 1
    %905 = vsyncpa [#allocation11], 1
    %s906 = scalar_lea.sflag [#allocation11], 1
    %907 = vsyncpa %s906, 1

</llo_original>
